<compile_context>
chip_gen: v7x
topology: tpu7x:2x2x1
jax: 0.10.0
libtpu: 0.0.40
codegen_flags: <defaults>
</compile_context>

<pallas_src>
import jax
import jax.numpy as jnp
from jax.experimental import pallas as pl
from jax.experimental.pallas import tpu as pltpu


def _round_up(x: int, m: int) -> int:
    return (x + m - 1) // m * m


def _gelu(x):
    # tanh-approximation GELU, evaluated in f32 (VPU + EUP tanh slot).
    # TODO(synk): PyTorch's default nn.GELU() is the exact erf form; this matches
    #             nn.GELU(approximate='tanh').  TODO(synk): bf16 GELU on v6e/v7x would
    #             halve EUP cost once streams are bf16, at a small accuracy cost.
    c = jnp.float32(0.7978845608028654)  # sqrt(2/pi)
    return 0.5 * x * (1.0 + jnp.tanh(c * (x + 0.044715 * x * x * x)))


def skip_kernel(x_ref, w1_ref, b1_ref, w2_ref, b2_ref, o_ref, acc_ref):
    """Fused: h = gelu(x @ W1 + b1); o = x + (h @ W2 + b2).  Dropout = identity (eval).

    Grid = (row_tiles, hidden_chunks).  The hidden axis is a reduction:
    acc_ref accumulates the partial resid_proj output across hidden chunks.
    """
    j = pl.program_id(1)
    nj = pl.num_programs(1)

    @pl.when(j == 0)
    def _():
        acc_ref[...] = jnp.zeros_like(acc_ref)

    x = x_ref[...]                                   # (TM, n_out_p), activation dtype
    xb = x.astype(jnp.bfloat16)                      # bf16 MXU operand

    # inner layer chunk: Linear(n_out -> TH) + GELU  (bf16 matmul, f32 accumulate)
    h = jnp.dot(xb, w1_ref[...], preferred_element_type=jnp.float32) + b1_ref[...]
    h = _gelu(h)                                     # f32 elementwise

    # resid_proj chunk: (TM, TH) @ (TH, n_out_p) accumulated in f32
    acc_ref[...] += jnp.dot(h.astype(jnp.bfloat16), w2_ref[...],
                            preferred_element_type=jnp.float32)

    @pl.when(j == nj - 1)
    def _():
        # drop_resid: eval-mode dropout == identity.
        # TODO(synk): training-mode dropout would use pltpu.prng_seed(seed +
        #             pl.program_id(0)) + pltpu.prng_random_bits per row tile.
        y = acc_ref[...] + b2_ref[...]
        o_ref[...] = (x.astype(jnp.float32) + y).astype(o_ref.dtype)


def prepare_skip_params(w1, b1, w2, b2):
    """One-time parameter preprocessing: pad channel dims to 128 and cast to bf16.

    w1: (n_out, n_in), b1: (n_in,) or (1, n_in), w2: (n_in, n_out), b2: (n_out,) or (1, n_out).
    Weights are stored pre-transposed as (in_features, out_features).
    """
    n_out, n_in = w1.shape
    n_out_p = _round_up(n_out, 128)
    n_in_p = _round_up(n_in, 128)
    w1p = jnp.pad(w1, ((0, n_out_p - n_out), (0, n_in_p - n_in))).astype(jnp.bfloat16)
    w2p = jnp.pad(w2, ((0, n_in_p - n_in), (0, n_out_p - n_out))).astype(jnp.bfloat16)
    b1p = jnp.pad(b1.reshape(1, -1).astype(jnp.float32), ((0, 0), (0, n_in_p - n_in)))
    b2p = jnp.pad(b2.reshape(1, -1).astype(jnp.float32), ((0, 0), (0, n_out_p - n_out)))
    return (w1p, b1p, w2p, b2p, n_in, n_out)


def skip_forward(x, params, *, tm=512):
    """x: (B, T, n_out) in the model's activation dtype (streamed as-is)."""
    w1p, b1p, w2p, b2p, n_in, n_out = params
    B, T, nc = x.shape
    assert nc == n_out, "last dim of x must equal n_out"
    n_out_p, n_in_p = w1p.shape
    M = B * T
    itemsize = jnp.dtype(x.dtype).itemsize

    # Row tile: keep the grid >= 8 steps so each TensorCore (2 on v7x) gets >= 4
    # pipelined steps; per-step overhead is only ~0.35 us.
    TM = max(8, min(tm, _round_up((M + 7) // 8, 8)))
    Mp = _round_up(M, TM)

    # --- activation streaming: no pad / slice copies on the aligned fast path -----
    x2d = x.reshape(M, n_out)
    needs_pad = (Mp != M) or (n_out_p != n_out)
    if needs_pad:
        x2d = jnp.pad(x2d, ((0, Mp - M), (0, n_out_p - n_out)))

    # --- generation-aware VMEM budget & hidden-dim tiling fallback ----------------
    try:
        vmem_cap = int(pltpu.get_tpu_info().vmem_capacity_bytes)
    except Exception:
        vmem_cap = 64 << 20                    # conservative (v7x per-TC size)
    vmem_budget = int(0.75 * vmem_cap)

    fixed = 2 * 2 * TM * n_out_p * itemsize    # x + out tiles, double-buffered
    fixed += 2 * n_out_p * 4                   # b2 (double-buffered, constant block)
    fixed += TM * n_out_p * 4                  # f32 accumulator scratch
    fixed += 2 << 20                           # slack for Mosaic internal scratch
    per_col = 2 * (2 * n_out_p * 2)            # one W1 + one W2 column, bf16, x2 buffers
    per_col += 2 * 4                           # b1 column
    per_col += TM * 4                          # (TM, TH) f32 hidden intermediate

    TH = n_in_p                                # hidden chunk width (multiple of 128)
    while TH > 128 and (fixed + per_col * TH > vmem_budget or n_in_p % TH != 0):
        TH -= 128
    n_hid = n_in_p // TH

    vmem_limit = int(min(vmem_budget, max(fixed + per_col * TH, 16 << 20)))

    grid = (Mp // TM, n_hid)

    weight_bytes = (w1p.size + w2p.size) * 2 + (b1p.size + b2p.size) * 4
    # Weights are truly resident only when n_hid == 1; otherwise re-streamed per row tile.
    weight_traffic = weight_bytes * (grid[0] if n_hid > 1 else 1)
    cost = pl.CostEstimate(
        flops=2 * 2 * Mp * n_out_p * n_in_p,            # two matmuls
        transcendentals=Mp * n_in_p,                    # tanh in GELU
        bytes_accessed=2 * Mp * n_out_p * itemsize + weight_traffic,
    )

    out2d = pl.pallas_call(
        skip_kernel,
        out_shape=jax.ShapeDtypeStruct((Mp, n_out_p), x.dtype),
        grid_spec=pltpu.PrefetchScalarGridSpec(
            num_scalar_prefetch=0,
            grid=grid,
            in_specs=[
                pl.BlockSpec((TM, n_out_p), lambda i, j: (i, 0)),   # x: streamed rows
                pl.BlockSpec((n_out_p, TH), lambda i, j: (0, j)),   # W1 hidden chunk
                pl.BlockSpec((1, TH), lambda i, j: (0, j)),         # b1 hidden chunk
                pl.BlockSpec((TH, n_out_p), lambda i, j: (j, 0)),   # W2 hidden chunk
                pl.BlockSpec((1, n_out_p), lambda i, j: (0, 0)),    # b2: resident
            ],
            out_specs=pl.BlockSpec((TM, n_out_p), lambda i, j: (i, 0)),
            scratch_shapes=[pltpu.VMEM((TM, n_out_p), jnp.float32)],
        ),
        compiler_params=pltpu.CompilerParams(
            dimension_semantics=("parallel", "arbitrary"),
            vmem_limit_bytes=vmem_limit,
        ),
        input_output_aliases={0: 0},            # in/out share dtype & shape
        cost_estimate=cost,
    )(x2d, w1p, b1p, w2p, b2p)

    if needs_pad:
        out2d = out2d[:M, :n_out]
    return out2d.reshape(B, T, n_out)


def reference_forward(x, w1, b1, w2, b2):
    # Same numerics as the kernel: bf16 matmul operands, f32 accumulation / elementwise,
    # residual add in f32, cast back to the activation dtype.
    xf = x.astype(jnp.float32)
    h = jnp.dot(x.astype(jnp.bfloat16), w1.astype(jnp.bfloat16),
                preferred_element_type=jnp.float32) + b1.astype(jnp.float32)
    h = _gelu(h)
    y = jnp.dot(h.astype(jnp.bfloat16), w2.astype(jnp.bfloat16),
                preferred_element_type=jnp.float32) + b2.astype(jnp.float32)
    return (xf + y).astype(x.dtype)


if __name__ == "__main__":
    # Small, lane-aligned shapes: residual width n_out, hidden n_in (both 128-multiples).
    B, T = 2, 512            # M = 1024 rows -> 8 row tiles at TM=128 (>=4 per TC on v7x)
    n_out, n_in = 128, 256
    p_drop = 0.1             # stored but inactive (eval mode)

    key = jax.random.PRNGKey(0)
    kx, k1, k2, k3, k4 = jax.random.split(key, 5)

    # Activations in bf16 (model dtype) -> halves streamed HBM bytes.
    x = jax.random.normal(kx, (B, T, n_out), dtype=jnp.float32).astype(jnp.bfloat16)

    # Deterministic parameter init (PyTorch Linear-like scale), stored
    # pre-transposed as (in_features, out_features) for row-major matmul.
    w1 = jax.random.uniform(k1, (n_out, n_in), jnp.float32,
                            -1.0 / jnp.sqrt(n_out), 1.0 / jnp.sqrt(n_out))
    b1 = jax.random.uniform(k2, (1, n_in), jnp.float32,
                            -1.0 / jnp.sqrt(n_out), 1.0 / jnp.sqrt(n_out))
    w2 = jax.random.uniform(k3, (n_in, n_out), jnp.float32,
                            -1.0 / jnp.sqrt(n_in), 1.0 / jnp.sqrt(n_in))
    b2 = jax.random.uniform(k4, (1, n_out), jnp.float32,
                            -1.0 / jnp.sqrt(n_in), 1.0 / jnp.sqrt(n_in))

    # One-time weight preprocessing (hoisted out of the per-call path).
    params = prepare_skip_params(w1, b1, w2, b2)

    # Reference computed first (kernel aliases its input buffer with the output).
    ref = reference_forward(x, w1, b1, w2, b2)

    out = skip_forward(x, params)
    jax.block_until_ready(out)

    assert out.shape == x.shape
    assert out.dtype == x.dtype
    assert jnp.allclose(out.astype(jnp.float32), ref.astype(jnp.float32),
                        atol=2e-2, rtol=2e-2), "mismatch vs reference"

    print("KERNEL_OK")
</pallas_src>

<mosaic_0001>
module attributes {stable_mosaic.version = 11 : i64} {
  func.func @skip_kernel(%arg0: i32, %arg1: i32, %arg2: memref<128x128xbf16, #tpu.memory_space<vmem>>, %arg3: memref<128x256xbf16, #tpu.memory_space<vmem>>, %arg4: memref<1x256xf32, #tpu.memory_space<vmem>>, %arg5: memref<256x128xbf16, #tpu.memory_space<vmem>>, %arg6: memref<1x128xf32, #tpu.memory_space<vmem>>, %arg7: memref<128x128xbf16, #tpu.memory_space<vmem>>, %arg8: memref<128x128xf32, #tpu.memory_space<vmem>>) attributes {dimension_semantics = [#tpu.dimension_semantics<parallel>, #tpu.dimension_semantics<arbitrary>], iteration_bounds = array<i64: 8, 1>, scalar_prefetch = 0 : i64, scratch_operands = 1 : i64, tpu.core_type = #tpu.core_type<tc>, window_params = [{transform_indices = @transform_0, window_bounds = array<i64: 128, 128>}, {transform_indices = @transform_1, window_bounds = array<i64: 128, 256>}, {transform_indices = @transform_2, window_bounds = array<i64: 1, 256>}, {transform_indices = @transform_3, window_bounds = array<i64: 256, 128>}, {pipeline_mode = #tpu.pipeline_mode<synchronous>, transform_indices = @transform_4, window_bounds = array<i64: 1, 128>}, {transform_indices = @transform_5, window_bounds = array<i64: 128, 128>}]} {
    %c0_i32 = arith.constant 0 : i32
    %0 = arith.cmpi eq, %arg1, %c0_i32 : i32
    %1 = arith.extui %0 : i1 to i32
    %c0_i32_0 = arith.constant 0 : i32
    %2 = arith.cmpi ne, %1, %c0_i32_0 : i32
    scf.if %2 {
      %cst_19 = arith.constant 0.000000e+00 : f32
      %31 = vector.broadcast %cst_19 : f32 to vector<128x128xf32>
      %c0_20 = arith.constant 0 : index
      %c0_21 = arith.constant 0 : index
      %32 = vector.load %arg8[%c0_20, %c0_21] : memref<128x128xf32, #tpu.memory_space<vmem>>, vector<128x128xf32>
      tpu.vector_store %arg8[%c0_20, %c0_21], %31 {strides = array<i32>} : memref<128x128xf32, #tpu.memory_space<vmem>>, vector<128x128xf32>,
    } else {
    }
    %c0 = arith.constant 0 : index
    %c0_1 = arith.constant 0 : index
    %3 = vector.load %arg2[%c0, %c0_1] : memref<128x128xbf16, #tpu.memory_space<vmem>>, vector<128x128xbf16>
    %c0_2 = arith.constant 0 : index
    %c0_3 = arith.constant 0 : index
    %4 = vector.load %arg3[%c0_2, %c0_3] : memref<128x256xbf16, #tpu.memory_space<vmem>>, vector<128x256xbf16>
    %cst = arith.constant dense<0.000000e+00> : vector<128x256xf32>
    %5 = tpu.matmul %3, %4, %cst {dimension_numbers = #tpu.dot_dimension_numbers<[1], [0], [0], [1], [0, 0, 1, 1], [], []>} : vector<128x128xbf16>, vector<128x256xbf16>, vector<128x256xf32> -> vector<128x256xf32>
    %c0_4 = arith.constant 0 : index
    %c0_5 = arith.constant 0 : index
    %6 = vector.load %arg4[%c0_4, %c0_5] : memref<1x256xf32, #tpu.memory_space<vmem>>, vector<1x256xf32>
    %7 = vector.broadcast %6 : vector<1x256xf32> to vector<128x256xf32>
    %8 = arith.addf %5, %7 : vector<128x256xf32>
    %cst_6 = arith.constant 5.000000e-01 : f32
    %9 = vector.broadcast %cst_6 : f32 to vector<128x256xf32>
    %10 = arith.mulf %9, %8 : vector<128x256xf32>
    %cst_7 = arith.constant 4.471500e-02 : f32
    %11 = vector.broadcast %cst_7 : f32 to vector<128x256xf32>
    %12 = arith.mulf %11, %8 : vector<128x256xf32>
    %13 = arith.mulf %12, %8 : vector<128x256xf32>
    %14 = arith.mulf %13, %8 : vector<128x256xf32>
    %15 = arith.addf %8, %14 : vector<128x256xf32>
    %cst_8 = arith.constant 0.797884583 : f32
    %16 = vector.broadcast %cst_8 : f32 to vector<128x256xf32>
    %17 = arith.mulf %16, %15 : vector<128x256xf32>
    %18 = math.tanh %17 : vector<128x256xf32>
    %cst_9 = arith.constant 1.000000e+00 : f32
    %19 = vector.broadcast %cst_9 : f32 to vector<128x256xf32>
    %20 = arith.addf %19, %18 : vector<128x256xf32>
    %21 = arith.mulf %10, %20 : vector<128x256xf32>
    %c0_10 = arith.constant 0 : index
    %c0_11 = arith.constant 0 : index
    %22 = vector.load %arg8[%c0_10, %c0_11] : memref<128x128xf32, #tpu.memory_space<vmem>>, vector<128x128xf32>
    %23 = arith.truncf %21 : vector<128x256xf32> to vector<128x256xbf16>
    %c0_12 = arith.constant 0 : index
    %c0_13 = arith.constant 0 : index
    %24 = vector.load %arg5[%c0_12, %c0_13] : memref<256x128xbf16, #tpu.memory_space<vmem>>, vector<256x128xbf16>
    %cst_14 = arith.constant dense<0.000000e+00> : vector<128x128xf32>
    %25 = tpu.matmul %23, %24, %cst_14 {dimension_numbers = #tpu.dot_dimension_numbers<[1], [0], [0], [1], [0, 0, 1, 1], [], []>} : vector<128x256xbf16>, vector<256x128xbf16>, vector<128x128xf32> -> vector<128x128xf32>
    %26 = arith.addf %22, %25 : vector<128x128xf32>
    %c0_15 = arith.constant 0 : index
    %c0_16 = arith.constant 0 : index
    %27 = vector.load %arg8[%c0_15, %c0_16] : memref<128x128xf32, #tpu.memory_space<vmem>>, vector<128x128xf32>
    tpu.vector_store %arg8[%c0_15, %c0_16], %26 {strides = array<i32>} : memref<128x128xf32, #tpu.memory_space<vmem>>, vector<128x128xf32>,
    %c0_i32_17 = arith.constant 0 : i32
    %28 = arith.cmpi eq, %arg1, %c0_i32_17 : i32
    %29 = arith.extui %28 : i1 to i32
    %c0_i32_18 = arith.constant 0 : i32
    %30 = arith.cmpi ne, %29, %c0_i32_18 : i32
    scf.if %30 {
      %c0_19 = arith.constant 0 : index
      %c0_20 = arith.constant 0 : index
      %31 = vector.load %arg8[%c0_19, %c0_20] : memref<128x128xf32, #tpu.memory_space<vmem>>, vector<128x128xf32>
      %c0_21 = arith.constant 0 : index
      %c0_22 = arith.constant 0 : index
      %32 = vector.load %arg6[%c0_21, %c0_22] : memref<1x128xf32, #tpu.memory_space<vmem>>, vector<1x128xf32>
      %33 = vector.broadcast %32 : vector<1x128xf32> to vector<128x128xf32>
      %34 = arith.addf %31, %33 : vector<128x128xf32>
      %35 = arith.extf %3 : vector<128x128xbf16> to vector<128x128xf32>
      %36 = arith.addf %35, %34 : vector<128x128xf32>
      %37 = arith.truncf %36 : vector<128x128xf32> to vector<128x128xbf16>
      %c0_23 = arith.constant 0 : index
      %c0_24 = arith.constant 0 : index
      %38 = vector.load %arg7[%c0_23, %c0_24] : memref<128x128xbf16, #tpu.memory_space<vmem>>, vector<128x128xbf16>
      tpu.vector_store %arg7[%c0_23, %c0_24], %37 {strides = array<i32>} : memref<128x128xbf16, #tpu.memory_space<vmem>>, vector<128x128xbf16>,
    } else {
    }
    return
  }
  func.func @transform_0(%arg0: i32, %arg1: i32) -> (i32, i32) {
    %c0_i32 = arith.constant 0 : i32
    %c0_i32_0 = arith.constant 0 : i32
    return %arg0, %c0_i32 : i32, i32
  }
  func.func @transform_1(%arg0: i32, %arg1: i32) -> (i32, i32) {
    %c0_i32 = arith.constant 0 : i32
    %c0_i32_0 = arith.constant 0 : i32
    return %c0_i32, %arg1 : i32, i32
  }
  func.func @transform_2(%arg0: i32, %arg1: i32) -> (i32, i32) {
    %c0_i32 = arith.constant 0 : i32
    %c0_i32_0 = arith.constant 0 : i32
    return %c0_i32, %arg1 : i32, i32
  }
  func.func @transform_3(%arg0: i32, %arg1: i32) -> (i32, i32) {
    %c0_i32 = arith.constant 0 : i32
    %c0_i32_0 = arith.constant 0 : i32
    return %arg1, %c0_i32 : i32, i32
  }
  func.func @transform_4(%arg0: i32, %arg1: i32) -> (i32, i32) {
    %c0_i32 = arith.constant 0 : i32
    %c0_i32_0 = arith.constant 0 : i32
    %c0_i32_1 = arith.constant 0 : i32
    return %c0_i32, %c0_i32_0 : i32, i32
  }
  func.func @transform_5(%arg0: i32, %arg1: i32) -> (i32, i32) {
    %c0_i32 = arith.constant 0 : i32
    %c0_i32_0 = arith.constant 0 : i32
    return %arg0, %c0_i32 : i32, i32
  }
}

</mosaic_0001>

<llo_original>
// kernel: tpu_custom_call.1
$region0: #{tpu_custom_call.1}
  #allocation0 [shape = 'u32[]', space=smem, size = 0x4, offset = 0x4, fixed_abs, tag = 'smem constant byte address 0x4 - core index']
  #allocation1 [shape = 'u32[144,128]{1,0:T(1,128)}', space=vmem, size = 0x12000, scoped, tag = 'internal scratch']
  #allocation2 [shape = 'f32[128,128]{1,0:T(8,128)}', space=vmem, size = 0x10000, scoped, tag = 'scratch operand']
  %s0 = inlined_call_operand.hbm [shape: bf16[1024,128], index: 0, kind: input, shape index: {}, may-alias: {0,5}]
  %s1 = inlined_call_operand.vmem [shape: bf16[128,256], index: 1, kind: input, shape index: {}]
  %s2 = inlined_call_operand.vmem [shape: f32[1,256], index: 2, kind: input, shape index: {}]
  %s3 = inlined_call_operand.vmem [shape: bf16[256,128], index: 3, kind: input, shape index: {}]
  %s4 = inlined_call_operand.vmem [shape: f32[1,128], index: 4, kind: input, shape index: {}]
  %s5 = inlined_call_operand.hbm [shape: bf16[1024,128], index: 5, kind: output, shape index: {}, may-alias: {0,5}]
  %s6 = sld [smem:[#allocation0]]
  $region65: #{tpu_custom_call.1} parent=0
    _
  %s8 = ssub.s32 1, %s6
  %s9 = scalar_select 0, %s8, %s6
  $region1: #{tpu_custom_call.1} parent=0
    #allocation3 [shape = 'u8[65536]{0}', space=vmem, size = 0x10000, scoped, tag = 'input window, operand 0']
    #allocation4 [shape = 's32[2]{0}', space=sflag, size = 0x8, scoped, tag = 'scoped memory for tpu_custom_call.1']
    #allocation5 [shape = 's32[2]{0}', space=sflag, size = 0x8, scoped, tag = 'scoped memory for tpu_custom_call.1']
    #allocation6 [shape = 'u8[65536]{0}', space=vmem, size = 0x10000, scoped, tag = 'output window, operand 0']
    %10 = vsyncpa [#allocation4], 0
    %s11 = scalar_lea.sflag [#allocation4], 1
    %12 = vsyncpa %s11, 0
    %13 = vsyncpa [#allocation5], 0
    %s14 = scalar_lea.sflag [#allocation5], 1
    %15 = vsyncpa %s14, 0
    loop: start=0, step=1, limit=10
    $region2: #{tpu_custom_call.1} parent=1 // loop_pre_header
      _
    $region3: #{tpu_custom_call.1} parent=1 // loop_header
      %s17 = sphi 0, %s21
      %p18 = scmp.ge.s32.totalorder %s17, 10
      %s24 = sphi 0, %s36
      %s25 = sphi 0, %s32
      %s26 = sphi 0, %s24
      %s27 = sphi 0, %s25
      %s28 = sphi 0, %s26
      %s29 = sphi 0, %s27
      %s39 = sphi 0, %s41
      %s42 = sphi 0, %s39
      %s43 = sphi 0, %s42
      %s59 = sphi 0, %s43
      %s65 = sphi 0, %s67
      %s68 = sphi 0, %s65
      %s69 = sphi 0, %s68
      %s85 = sphi 0, %s69
      %s91 = sphi 0, %s93
      %s94 = sphi 0, %s91
      %s95 = sphi 0, %s94
      %s111 = sphi 0, %s95
      %s117 = sphi 0, %s119
      %s120 = sphi 0, %s117
      %s121 = sphi 0, %s120
      %s137 = sphi 0, %s121
      %s141 = sphi 0, %s141
      %s143 = sphi 0, %s141
      %s144 = sphi 0, %s143
      %s158 = sphi 0, %s144
      %s164 = sphi 0, %s166
      %s167 = sphi 0, %s164
      %s168 = sphi 0, %s167
      %s184 = sphi 0, %s168
    $region4: #{tpu_custom_call.1} parent=1 // loop_header_branch
      %20 = sbr.rel (%p18) target = $region8
    $region5: #{tpu_custom_call.1} parent=1 // loop_body
      %s22 = ssub.s32 %s17, 1
      %s23 = ssub.s32 %s17, 2
      %s30 = sadd.s32 1, %s25
      %p31 = scmp.ge.s32.totalorder %s30, 1
      %s32 = scalar_select %p31, 0, %s30
      %s33 = sadd.s32 1, %s24
      %s34 = scalar_select %p31, %s33, %s24
      %p35 = scmp.ge.s32.totalorder %s34, 8
      %s36 = scalar_select %p35, 0, %s34
      %s37 = ssub.s32 %s24, %s36
      %p38 = scmp.eq.s32.totalorder %s37, 0
      %s40 = sadd.s32 %s39, 1
      %s41 = scalar_select %p38, %s39, %s40
      %p44 = pneg %p38
      %p45 = scmp.eq.s32.totalorder %s17, 7
      %p46 = por %p44, %p45
      %p47 = scmp.ne.s32.totalorder %s39, %s42
      %p48 = scmp.eq.s32.totalorder %s17, 0
      %p49 = por %p47, %p48
      %p50 = scmp.ne.s32.totalorder %s39, %s42
      %p51 = scmp.eq.s32.totalorder %s22, 7
      %p52 = por %p50, %p51
      %p53 = scmp.ne.s32.totalorder %s42, %s43
      %p54 = scmp.eq.s32.totalorder %s22, 0
      %p55 = por %p53, %p54
      %p56 = scmp.ne.s32.totalorder %s42, %s43
      %p57 = scmp.eq.s32.totalorder %s23, 7
      %p58 = por %p56, %p57
      %p60 = scmp.ne.s32.totalorder %s43, %s59
      %p61 = scmp.eq.s32.totalorder %s23, 0
      %p62 = por %p60, %p61
      %s63 = ssub.s32 %s25, %s32
      %p64 = scmp.eq.s32.totalorder %s63, 0
      %s66 = sadd.s32 %s65, 1
      %s67 = scalar_select %p64, %s65, %s66
      %p70 = pneg %p64
      %p71 = scmp.eq.s32.totalorder %s17, 7
      %p72 = por %p70, %p71
      %p73 = scmp.ne.s32.totalorder %s65, %s68
      %p74 = scmp.eq.s32.totalorder %s17, 0
      %p75 = por %p73, %p74
      %p76 = scmp.ne.s32.totalorder %s65, %s68
      %p77 = scmp.eq.s32.totalorder %s22, 7
      %p78 = por %p76, %p77
      %p79 = scmp.ne.s32.totalorder %s68, %s69
      %p80 = scmp.eq.s32.totalorder %s22, 0
      %p81 = por %p79, %p80
      %p82 = scmp.ne.s32.totalorder %s68, %s69
      %p83 = scmp.eq.s32.totalorder %s23, 7
      %p84 = por %p82, %p83
      %p86 = scmp.ne.s32.totalorder %s69, %s85
      %p87 = scmp.eq.s32.totalorder %s23, 0
      %p88 = por %p86, %p87
      %s89 = ssub.s32 %s25, %s32
      %p90 = scmp.eq.s32.totalorder %s89, 0
      %s92 = sadd.s32 %s91, 1
      %s93 = scalar_select %p90, %s91, %s92
      %p96 = pneg %p90
      %p97 = scmp.eq.s32.totalorder %s17, 7
      %p98 = por %p96, %p97
      %p99 = scmp.ne.s32.totalorder %s91, %s94
      %p100 = scmp.eq.s32.totalorder %s17, 0
      %p101 = por %p99, %p100
      %p102 = scmp.ne.s32.totalorder %s91, %s94
      %p103 = scmp.eq.s32.totalorder %s22, 7
      %p104 = por %p102, %p103
      %p105 = scmp.ne.s32.totalorder %s94, %s95
      %p106 = scmp.eq.s32.totalorder %s22, 0
      %p107 = por %p105, %p106
      %p108 = scmp.ne.s32.totalorder %s94, %s95
      %p109 = scmp.eq.s32.totalorder %s23, 7
      %p110 = por %p108, %p109
      %p112 = scmp.ne.s32.totalorder %s95, %s111
      %p113 = scmp.eq.s32.totalorder %s23, 0
      %p114 = por %p112, %p113
      %s115 = ssub.s32 %s25, %s32
      %p116 = scmp.eq.s32.totalorder %s115, 0
      %s118 = sadd.s32 %s117, 1
      %s119 = scalar_select %p116, %s117, %s118
      %p122 = pneg %p116
      %p123 = scmp.eq.s32.totalorder %s17, 7
      %p124 = por %p122, %p123
      %p125 = scmp.ne.s32.totalorder %s117, %s120
      %p126 = scmp.eq.s32.totalorder %s17, 0
      %p127 = por %p125, %p126
      %p128 = scmp.ne.s32.totalorder %s117, %s120
      %p129 = scmp.eq.s32.totalorder %s22, 7
      %p130 = por %p128, %p129
      %p131 = scmp.ne.s32.totalorder %s120, %s121
      %p132 = scmp.eq.s32.totalorder %s22, 0
      %p133 = por %p131, %p132
      %p134 = scmp.ne.s32.totalorder %s120, %s121
      %p135 = scmp.eq.s32.totalorder %s23, 7
      %p136 = por %p134, %p135
      %p138 = scmp.ne.s32.totalorder %s121, %s137
      %p139 = scmp.eq.s32.totalorder %s23, 0
      %p140 = por %p138, %p139
      %s142 = sadd.s32 %s141, 1
      %p145 = scmp.eq.s32.totalorder %s17, 7
      %p146 = scmp.ne.s32.totalorder %s141, %s143
      %p147 = scmp.eq.s32.totalorder %s17, 0
      %p148 = por %p146, %p147
      %p149 = scmp.ne.s32.totalorder %s141, %s143
      %p150 = scmp.eq.s32.totalorder %s22, 7
      %p151 = por %p149, %p150
      %p152 = scmp.ne.s32.totalorder %s143, %s144
      %p153 = scmp.eq.s32.totalorder %s22, 0
      %p154 = por %p152, %p153
      %p155 = scmp.ne.s32.totalorder %s143, %s144
      %p156 = scmp.eq.s32.totalorder %s23, 7
      %p157 = por %p155, %p156
      %p159 = scmp.ne.s32.totalorder %s144, %s158
      %p160 = scmp.eq.s32.totalorder %s23, 0
      %p161 = por %p159, %p160
      %s162 = ssub.s32 %s24, %s36
      %p163 = scmp.eq.s32.totalorder %s162, 0
      %s165 = sadd.s32 %s164, 1
      %s166 = scalar_select %p163, %s164, %s165
      %p169 = pneg %p163
      %p170 = scmp.eq.s32.totalorder %s17, 7
      %p171 = por %p169, %p170
      %p172 = scmp.ne.s32.totalorder %s164, %s167
      %p173 = scmp.eq.s32.totalorder %s17, 0
      %p174 = por %p172, %p173
      %p175 = scmp.ne.s32.totalorder %s164, %s167
      %p176 = scmp.eq.s32.totalorder %s22, 7
      %p177 = por %p175, %p176
      %p178 = scmp.ne.s32.totalorder %s167, %s168
      %p179 = scmp.eq.s32.totalorder %s22, 0
      %p180 = por %p178, %p179
      %p181 = scmp.ne.s32.totalorder %s167, %s168
      %p182 = scmp.eq.s32.totalorder %s23, 7
      %p183 = por %p181, %p182
      %p185 = scmp.ne.s32.totalorder %s168, %s184
      %p186 = scmp.eq.s32.totalorder %s23, 0
      %p187 = por %p185, %p186
      %p188 = scmp.le.s32.totalorder 1, %s17
      %p189 = scmp.lt.s32.totalorder %s17, 9
      %p190 = pnand %p188, %p189
      %p191 = pneg %p190
      // Predicated region
      $region9: #{tpu_custom_call.1} parent=5 // pred_check
        _
      $region10: #{tpu_custom_call.1} parent=5 // pred_check_branch
        %193 = sbr.rel (%p190) target = $region12
      $region11: #{tpu_custom_call.1} parent=5 // pred_region
        %s194 = ssub.s32 %s17, 1
        // Predicated region
        $region13: #{tpu_custom_call.1} parent=11 // pred_check
          %p195 = pneg %p81
        $region14: #{tpu_custom_call.1} parent=11 // pred_check_branch
          %197 = sbr.rel (%p195) target = $region16
        $region15: #{tpu_custom_call.1} parent=11 // pred_region
          %s198 = smul.u32 2, %s27
          %p199 = scmp.lt.s32.totalorder %s198, 1
          %s200 = scalar_select %p199, %s198, 1
          %s201 = smul.addr %s200, 4
          %s202 = scalar_lea.vmem %s1, %s201
          %s203 = smul.u32 2, %s27
        $region16: #{tpu_custom_call.1} parent=11 // pred_fallthru
          _
        // Predicated region
        $region17: #{tpu_custom_call.1} parent=11 // pred_check
          %p204 = pneg %p107
        $region18: #{tpu_custom_call.1} parent=11 // pred_check_branch
          %206 = sbr.rel (%p204) target = $region20
        $region19: #{tpu_custom_call.1} parent=11 // pred_region
          %s207 = smul.u32 2, %s27
          %p208 = scmp.lt.s32.totalorder %s207, 1
          %s209 = scalar_select %p208, %s207, 1
          %s210 = scalar_lea.vmem %s2, %s209
          %s211 = smul.u32 2, %s27
        $region20: #{tpu_custom_call.1} parent=11 // pred_fallthru
          _
        // Predicated region
        $region21: #{tpu_custom_call.1} parent=11 // pred_check
          %p212 = pneg %p133
        $region22: #{tpu_custom_call.1} parent=11 // pred_check_branch
          %214 = sbr.rel (%p212) target = $region24
        $region23: #{tpu_custom_call.1} parent=11 // pred_region
          %s215 = smul.u32 32, %s27
          %p216 = scmp.lt.s32.totalorder %s215, 31
          %s217 = scalar_select %p216, %s215, 31
          %s218 = smul.addr %s217, 4
          %s219 = scalar_lea.vmem %s3, %s218
          %s220 = smul.u32 32, %s27
        $region24: #{tpu_custom_call.1} parent=11 // pred_fallthru
          _
        // Predicated region
        $region25: #{tpu_custom_call.1} parent=11 // pred_check
          %p221 = pneg %p154
        $region26: #{tpu_custom_call.1} parent=11 // pred_check_branch
          %223 = sbr.rel (%p221) target = $region28
        $region27: #{tpu_custom_call.1} parent=11 // pred_region
          _
        $region28: #{tpu_custom_call.1} parent=11 // pred_fallthru
          _
      $region12: #{tpu_custom_call.1} parent=5 // pred_fallthru
        _
      %p224 = scmp.lt.s32.totalorder %s17, 8
      // Predicated region
      $region29: #{tpu_custom_call.1} parent=5 // pred_check
        %p225 = pneg %p224
      $region30: #{tpu_custom_call.1} parent=5 // pred_check_branch
        %227 = sbr.rel (%p225) target = $region32
      $region31: #{tpu_custom_call.1} parent=5 // pred_region
        // Predicated region
        $region33: #{tpu_custom_call.1} parent=31 // pred_check
          %p228 = pneg %p49
        $region34: #{tpu_custom_call.1} parent=31 // pred_check_branch
          %230 = sbr.rel (%p228) target = $region36
        $region35: #{tpu_custom_call.1} parent=31 // pred_region
          %s231 = sand.u32 %s39, 1
          %s232 = scalar_lea.sflag [#allocation4], %s231
          %s233 = sand.u32 %s39, 1
          %s234 = smul.addr %s233, 64
          %s235 = scalar_lea.vmem [#allocation3], %s234
          %s236 = smul.u32 16, %s24
          %s238 = ssub.s32 1024, 1024
          %239 = vsyncadd %s232, %s238
          %s240 = smul.addr %s236, 64
          %s241 = scalar_lea.hbm %s0, %s240
          %s242 = sshll.u32 %s235, 4
          %s243 = int_to_ptr.vmem [resolvable:$true] %s242
          %248 = dma.hbm_to_vmem [thread:$0]  %s241, 1024, %s243, %s232, 64, 64, 4
        $region36: #{tpu_custom_call.1} parent=31 // pred_fallthru
          _
      $region32: #{tpu_custom_call.1} parent=5 // pred_fallthru
        _
      %p249 = scmp.le.s32.totalorder 1, %s17
      %p250 = scmp.lt.s32.totalorder %s17, 9
      %p251 = pnand %p249, %p250
      %p252 = pneg %p251
      // Predicated region
      $region37: #{tpu_custom_call.1} parent=5 // pred_check
        _
      $region38: #{tpu_custom_call.1} parent=5 // pred_check_branch
        %254 = sbr.rel (%p251) target = $region40
      $region39: #{tpu_custom_call.1} parent=5 // pred_region
        %s255 = ssub.s32 %s17, 1
        %s256 = sand.u32 %s42, 1
        %s257 = scalar_lea.sflag [#allocation4], %s256
        %s258 = sand.u32 %s42, 1
        %s259 = smul.addr %s258, 64
        %s260 = scalar_lea.vmem [#allocation3], %s259
        // Predicated region
        $region41: #{tpu_custom_call.1} parent=39 // pred_check
          %p261 = pneg %p55
        $region42: #{tpu_custom_call.1} parent=39 // pred_check_branch
          %263 = sbr.rel (%p261) target = $region44
        $region43: #{tpu_custom_call.1} parent=39 // pred_region
          %264 = dma.done %s257, 1024
        $region44: #{tpu_custom_call.1} parent=39 // pred_fallthru
          _
        %s265 = sand.u32 %s42, 1
        %s266 = scalar_lea.sflag [#allocation4], %s265
        %s267 = sand.u32 %s42, 1
        %s268 = smul.addr %s267, 64
        %s269 = scalar_lea.vmem [#allocation3], %s268
        %p270 = pneg %p55
        %p271 = pneg %p52
        %s272 = smul.u32 2, %s27
        %p273 = scmp.lt.s32.totalorder %s272, 1
        %s274 = scalar_select %p273, %s272, 1
        %s275 = smul.addr %s274, 4
        %s276 = scalar_lea.vmem %s1, %s275
        %p277 = pneg %p81
        %p278 = pneg %p78
        %s279 = smul.u32 2, %s27
        %p280 = scmp.lt.s32.totalorder %s279, 1
        %s281 = scalar_select %p280, %s279, 1
        %s282 = scalar_lea.vmem %s2, %s281
        %p283 = pneg %p107
        %p284 = pneg %p104
        %s285 = smul.u32 32, %s27
        %p286 = scmp.lt.s32.totalorder %s285, 31
        %s287 = scalar_select %p286, %s285, 31
        %s288 = smul.addr %s287, 4
        %s289 = scalar_lea.vmem %s3, %s288
        %p290 = pneg %p133
        %p291 = pneg %p130
        %p292 = pneg %p154
        %p293 = pneg %p151
        %p294 = pneg %p180
        %p295 = pneg %p177
        %s296 = sand.u32 %s167, 1
        %s297 = scalar_lea.sflag [#allocation5], %s296
        %s298 = sand.u32 %s167, 1
        %s299 = smul.addr %s298, 64
        %s300 = scalar_lea.vmem [#allocation6], %s299
        %s301 = smul.u32 16, %s26
        %s302 = smul.u32 2, %s27
        %p303 = scmp.lt.s32.totalorder %s302, 1
        %s304 = scalar_select %p303, %s302, 1
        %s305 = smul.addr %s304, 4
        %s306 = scalar_lea.vmem %s1, %s305
        %s307 = smul.u32 2, %s27
        %s308 = smul.u32 2, %s27
        %p309 = scmp.lt.s32.totalorder %s308, 1
        %s310 = scalar_select %p309, %s308, 1
        %s311 = scalar_lea.vmem %s2, %s310
        %s312 = smul.u32 2, %s27
        %s313 = smul.u32 32, %s27
        %p314 = scmp.lt.s32.totalorder %s313, 31
        %s315 = scalar_select %p314, %s313, 31
        %s316 = smul.addr %s315, 4
        %s317 = scalar_lea.vmem %s3, %s316
        %s318 = smul.u32 32, %s27
        %s319 = smul.u32 16, %s26
        %p321 = scmp.eq.s32.totalorder %s27, 0
        // Predicated region
        $region45: #{tpu_custom_call.1} parent=39 // pred_check
          %p322 = pneg %p321
        $region46: #{tpu_custom_call.1} parent=39 // pred_check_branch
          %324 = sbr.rel (%p322) target = $region48
        $region47: #{tpu_custom_call.1} parent=39 // pred_region
          %325 = vst [vmem:[#allocation2] sm:$0xff] 0.0
          %326 = vst [vmem:[#allocation2 + $0x8] sm:$0xff] 0.0
          %327 = vst [vmem:[#allocation2 + $0x10] sm:$0xff] 0.0
          %328 = vst [vmem:[#allocation2 + $0x18] sm:$0xff] 0.0
          %329 = vst [vmem:[#allocation2 + $0x20] sm:$0xff] 0.0
          %330 = vst [vmem:[#allocation2 + $0x28] sm:$0xff] 0.0
          %331 = vst [vmem:[#allocation2 + $0x30] sm:$0xff] 0.0
          %332 = vst [vmem:[#allocation2 + $0x38] sm:$0xff] 0.0
          %333 = vst [vmem:[#allocation2 + $0x40] sm:$0xff] 0.0
          %334 = vst [vmem:[#allocation2 + $0x48] sm:$0xff] 0.0
          %335 = vst [vmem:[#allocation2 + $0x50] sm:$0xff] 0.0
          %336 = vst [vmem:[#allocation2 + $0x58] sm:$0xff] 0.0
          %337 = vst [vmem:[#allocation2 + $0x60] sm:$0xff] 0.0
          %338 = vst [vmem:[#allocation2 + $0x68] sm:$0xff] 0.0
          %339 = vst [vmem:[#allocation2 + $0x70] sm:$0xff] 0.0
          %340 = vst [vmem:[#allocation2 + $0x78] sm:$0xff] 0.0
        $region48: #{tpu_custom_call.1} parent=39 // pred_fallthru
          _
        %v341 = vld [vmem:[%s260] sm:$0xf]
        %v342 = vld [vmem:[%s260 + $0x4] sm:$0xf]
        %v343 = vld [vmem:[%s260 + $0x8] sm:$0xf]
        %v344 = vld [vmem:[%s260 + $0xc] sm:$0xf]
        %v345 = vld [vmem:[%s260 + $0x10] sm:$0xf]
        %v346 = vld [vmem:[%s260 + $0x14] sm:$0xf]
        %v347 = vld [vmem:[%s260 + $0x18] sm:$0xf]
        %v348 = vld [vmem:[%s260 + $0x1c] sm:$0xf]
        %v349 = vld [vmem:[%s260 + $0x20] sm:$0xf]
        %v350 = vld [vmem:[%s260 + $0x24] sm:$0xf]
        %v351 = vld [vmem:[%s260 + $0x28] sm:$0xf]
        %v352 = vld [vmem:[%s260 + $0x2c] sm:$0xf]
        %v353 = vld [vmem:[%s260 + $0x30] sm:$0xf]
        %v354 = vld [vmem:[%s260 + $0x34] sm:$0xf]
        %v355 = vld [vmem:[%s260 + $0x38] sm:$0xf]
        %v356 = vld [vmem:[%s260 + $0x3c] sm:$0xf]
        %v357 = vld [vmem:[%s306] sm:$0xff]
        %v358 = vld [vmem:[%s306 + $0x8] sm:$0xff]
        %v359 = vld [vmem:[%s306 + $0x10] sm:$0xff]
        %v360 = vld [vmem:[%s306 + $0x18] sm:$0xff]
        %v361 = vld [vmem:[%s306 + $0x20] sm:$0xff]
        %v362 = vld [vmem:[%s306 + $0x28] sm:$0xff]
        %v363 = vld [vmem:[%s306 + $0x30] sm:$0xff]
        %v364 = vld [vmem:[%s306 + $0x38] sm:$0xff]
        %v365 = vld [vmem:[%s306 + $0x40] sm:$0xff]
        %v366 = vld [vmem:[%s306 + $0x48] sm:$0xff]
        %v367 = vld [vmem:[%s306 + $0x50] sm:$0xff]
        %v368 = vld [vmem:[%s306 + $0x58] sm:$0xff]
        %v369 = vld [vmem:[%s306 + $0x60] sm:$0xff]
        %v370 = vld [vmem:[%s306 + $0x68] sm:$0xff]
        %v371 = vld [vmem:[%s306 + $0x70] sm:$0xff]
        %v372 = vld [vmem:[%s306 + $0x78] sm:$0xff]
        %v373 = vld [vmem:[%s311] sm:$0x3]
        %v375 = vlaneseq
        %v376 = vshrl.u32 %v375, 7
        %v377 = vsub.s32 0, %v376
        %v378 = vrot.slane %v373, %v377
        %v379 = vlaneseq
        %v380 = vshrl.u32 %v379, 7
        %v381 = vsub.s32 1, %v380
        %v382 = vrot.slane %v373, %v381
        %v401 = vunpack.c.l.b16 %v341
        %v402 = vunpack.c.l.b16 %v342
        %v403 = vunpack.c.l.b16 %v343
        %v404 = vunpack.c.l.b16 %v344
        %v405 = vunpack.c.l.b16 %v345
        %v406 = vunpack.c.l.b16 %v346
        %v407 = vunpack.c.l.b16 %v347
        %v408 = vunpack.c.l.b16 %v348
        %v409 = vunpack.c.l.b16 %v349
        %v410 = vunpack.c.l.b16 %v350
        %v411 = vunpack.c.l.b16 %v351
        %v412 = vunpack.c.l.b16 %v352
        %v413 = vunpack.c.l.b16 %v353
        %v414 = vunpack.c.l.b16 %v354
        %v415 = vunpack.c.l.b16 %v355
        %v416 = vunpack.c.l.b16 %v356
        %v417 = vpack.c.b16 %v402, %v401
        %v418 = vpack.c.b16 %v404, %v403
        %v419 = vpack.c.b16 %v406, %v405
        %v420 = vpack.c.b16 %v408, %v407
        %v421 = vpack.c.b16 %v410, %v409
        %v422 = vpack.c.b16 %v412, %v411
        %v423 = vpack.c.b16 %v414, %v413
        %v424 = vpack.c.b16 %v416, %v415
        %v449 = vunpack.c.l.b16 %v357
        %v450 = vunpack.c.h.b16 %v357
        %v451 = vunpack.c.l.b16 %v358
        %v452 = vunpack.c.h.b16 %v358
        %v453 = vunpack.c.l.b16 %v359
        %v454 = vunpack.c.h.b16 %v359
        %v455 = vunpack.c.l.b16 %v360
        %v456 = vunpack.c.h.b16 %v360
        %v457 = vunpack.c.l.b16 %v361
        %v458 = vunpack.c.h.b16 %v361
        %v459 = vunpack.c.l.b16 %v362
        %v460 = vunpack.c.h.b16 %v362
        %v461 = vunpack.c.l.b16 %v363
        %v462 = vunpack.c.h.b16 %v363
        %v463 = vunpack.c.l.b16 %v364
        %v464 = vunpack.c.h.b16 %v364
        %v465 = vunpack.c.l.b16 %v365
        %v466 = vunpack.c.h.b16 %v365
        %v467 = vunpack.c.l.b16 %v366
        %v468 = vunpack.c.h.b16 %v366
        %v469 = vunpack.c.l.b16 %v367
        %v470 = vunpack.c.h.b16 %v367
        %v471 = vunpack.c.l.b16 %v368
        %v472 = vunpack.c.h.b16 %v368
        %v473 = vunpack.c.l.b16 %v369
        %v474 = vunpack.c.h.b16 %v369
        %v475 = vunpack.c.l.b16 %v370
        %v476 = vunpack.c.h.b16 %v370
        %v477 = vunpack.c.l.b16 %v371
        %v478 = vunpack.c.h.b16 %v371
        %v479 = vunpack.c.l.b16 %v372
        %v480 = vunpack.c.h.b16 %v372
        %v481 = vpack.c.b16 %v451, %v449
        %v482 = vpack.c.b16 %v452, %v450
        %v483 = vpack.c.b16 %v455, %v453
        %v484 = vpack.c.b16 %v456, %v454
        %v485 = vpack.c.b16 %v459, %v457
        %v486 = vpack.c.b16 %v460, %v458
        %v487 = vpack.c.b16 %v463, %v461
        %v488 = vpack.c.b16 %v464, %v462
        %v489 = vpack.c.b16 %v467, %v465
        %v490 = vpack.c.b16 %v468, %v466
        %v491 = vpack.c.b16 %v471, %v469
        %v492 = vpack.c.b16 %v472, %v470
        %v493 = vpack.c.b16 %v475, %v473
        %v494 = vpack.c.b16 %v476, %v474
        %v495 = vpack.c.b16 %v479, %v477
        %v496 = vpack.c.b16 %v480, %v478
        %513 = vmatprep.subr.bf16.mxu0 %v482
        %514 = vmatpush1.bf16.msra.mxu0 %v481
        %515 = vmatprep.subr.bf16.mxu0 %v484
        %516 = vmatpush1.bf16.msra.mxu0 %v483
        %517 = vmatprep.subr.bf16.mxu0 %v486
        %518 = vmatpush1.bf16.msra.mxu0 %v485
        %519 = vmatprep.subr.bf16.mxu0 %v488
        %520 = vmatpush1.bf16.msra.mxu0 %v487
        %521 = vmatprep.subr.bf16.mxu0 %v490
        %522 = vmatpush1.bf16.msra.mxu0 %v489
        %523 = vmatprep.subr.bf16.mxu0 %v492
        %524 = vmatpush1.bf16.msra.mxu0 %v491
        %525 = vmatprep.subr.bf16.mxu0 %v494
        %526 = vmatpush1.bf16.msra.mxu0 %v493
        %527 = vmatprep.subr.bf16.mxu0 %v496
        %528 = vmatpush1.bf16.msra.mxu0 %v495
        %529 = vmatprep.subr.bf16.mxu0 0
        %530 = vmatpush1.bf16.msra.mxu0 0
        %531 = vmatprep.subr.bf16.mxu0 0
        %532 = vmatpush1.bf16.msra.mxu0 0
        %533 = vmatprep.subr.bf16.mxu0 0
        %534 = vmatpush1.bf16.msra.mxu0 0
        %535 = vmatprep.subr.bf16.mxu0 0
        %536 = vmatpush1.bf16.msra.mxu0 0
        %537 = vmatprep.subr.bf16.mxu0 0
        %538 = vmatpush1.bf16.msra.mxu0 0
        %539 = vmatprep.subr.bf16.mxu0 0
        %540 = vmatpush1.bf16.msra.mxu0 0
        %541 = vmatprep.subr.bf16.mxu0 0
        %542 = vmatpush1.bf16.msra.mxu0 0
        %543 = vmatprep.subr.bf16.mxu0 0
        %544 = vmatpush1.bf16.msra.mxu0 0
        %545 = vmatprep.mubr.bf16.mxu0 0
        %546 = vmatmul.mubr.bf16.gmra.mrb[0].mxu0 %v417
        %v547 = vpop.f32.mrb[0].mxu0
        %v548 = vadd.f32 %v378, %v547
        %v549 = vpop.f32.mrb[0].mxu0
        %v550 = vadd.f32 %v382, %v549
        %v551 = vpop.f32.mrb[0].mxu0
        %v552 = vadd.f32 %v378, %v551
        %v553 = vpop.f32.mrb[0].mxu0
        %v554 = vadd.f32 %v382, %v553
        %555 = vmatprep.mubr.bf16.mxu0 0
        %556 = vmatmul.mubr.bf16.gmra.mrb[0].mxu0 %v418
        %v557 = vpop.f32.mrb[0].mxu0
        %v558 = vadd.f32 %v378, %v557
        %v559 = vpop.f32.mrb[0].mxu0
        %v560 = vadd.f32 %v382, %v559
        %v561 = vpop.f32.mrb[0].mxu0
        %v562 = vadd.f32 %v378, %v561
        %v563 = vpop.f32.mrb[0].mxu0
        %v564 = vadd.f32 %v382, %v563
        %565 = vmatprep.mubr.bf16.mxu0 0
        %566 = vmatmul.mubr.bf16.gmra.mrb[0].mxu0 %v419
        %v567 = vpop.f32.mrb[0].mxu0
        %v568 = vadd.f32 %v378, %v567
        %v569 = vpop.f32.mrb[0].mxu0
        %v570 = vadd.f32 %v382, %v569
        %v571 = vpop.f32.mrb[0].mxu0
        %v572 = vadd.f32 %v378, %v571
        %v573 = vpop.f32.mrb[0].mxu0
        %v574 = vadd.f32 %v382, %v573
        %575 = vmatprep.mubr.bf16.mxu0 0
        %576 = vmatmul.mubr.bf16.gmra.mrb[0].mxu0 %v420
        %v577 = vpop.f32.mrb[0].mxu0
        %v578 = vadd.f32 %v378, %v577
        %v579 = vpop.f32.mrb[0].mxu0
        %v580 = vadd.f32 %v382, %v579
        %v581 = vpop.f32.mrb[0].mxu0
        %v582 = vadd.f32 %v378, %v581
        %v583 = vpop.f32.mrb[0].mxu0
        %v584 = vadd.f32 %v382, %v583
        %585 = vmatprep.mubr.bf16.mxu0 0
        %586 = vmatmul.mubr.bf16.gmra.mrb[0].mxu0 %v421
        %v587 = vpop.f32.mrb[0].mxu0
        %v588 = vadd.f32 %v378, %v587
        %v589 = vpop.f32.mrb[0].mxu0
        %v590 = vadd.f32 %v382, %v589
        %v591 = vpop.f32.mrb[0].mxu0
        %v592 = vadd.f32 %v378, %v591
        %v593 = vpop.f32.mrb[0].mxu0
        %v594 = vadd.f32 %v382, %v593
        %595 = vmatprep.mubr.bf16.mxu0 0
        %596 = vmatmul.mubr.bf16.gmra.mrb[0].mxu0 %v422
        %v597 = vpop.f32.mrb[0].mxu0
        %v598 = vadd.f32 %v378, %v597
        %v599 = vpop.f32.mrb[0].mxu0
        %v600 = vadd.f32 %v382, %v599
        %v601 = vpop.f32.mrb[0].mxu0
        %v602 = vadd.f32 %v378, %v601
        %v603 = vpop.f32.mrb[0].mxu0
        %v604 = vadd.f32 %v382, %v603
        %605 = vmatprep.mubr.bf16.mxu0 0
        %606 = vmatmul.mubr.bf16.gmra.mrb[0].mxu0 %v423
        %v607 = vpop.f32.mrb[0].mxu0
        %v608 = vadd.f32 %v378, %v607
        %v609 = vpop.f32.mrb[0].mxu0
        %v610 = vadd.f32 %v382, %v609
        %v611 = vpop.f32.mrb[0].mxu0
        %v612 = vadd.f32 %v378, %v611
        %v613 = vpop.f32.mrb[0].mxu0
        %v614 = vadd.f32 %v382, %v613
        %615 = vmatprep.mubr.bf16.mxu0 0
        %616 = vmatmul.mubr.bf16.gmra.mrb[0].mxu0 %v424
        %v617 = vpop.f32.mrb[0].mxu0
        %v618 = vadd.f32 %v378, %v617
        %v619 = vpop.f32.mrb[0].mxu0
        %v620 = vadd.f32 %v382, %v619
        %v621 = vpop.f32.mrb[0].mxu0
        %v622 = vadd.f32 %v378, %v621
        %v623 = vpop.f32.mrb[0].mxu0
        %v624 = vadd.f32 %v382, %v623
        %625 = vdwg.mxu0
        %v626 = vmul.f32 %v548, 0.5
        %v627 = vmul.f32 %v550, 0.5
        %v628 = vmul.f32 %v552, 0.5
        %v629 = vmul.f32 %v554, 0.5
        %v630 = vmul.f32 %v558, 0.5
        %v631 = vmul.f32 %v560, 0.5
        %v632 = vmul.f32 %v562, 0.5
        %v633 = vmul.f32 %v564, 0.5
        %v634 = vmul.f32 %v568, 0.5
        %v635 = vmul.f32 %v570, 0.5
        %v636 = vmul.f32 %v572, 0.5
        %v637 = vmul.f32 %v574, 0.5
        %v638 = vmul.f32 %v578, 0.5
        %v639 = vmul.f32 %v580, 0.5
        %v640 = vmul.f32 %v582, 0.5
        %v641 = vmul.f32 %v584, 0.5
        %v642 = vmul.f32 %v588, 0.5
        %v643 = vmul.f32 %v590, 0.5
        %v644 = vmul.f32 %v592, 0.5
        %v645 = vmul.f32 %v594, 0.5
        %v646 = vmul.f32 %v598, 0.5
        %v647 = vmul.f32 %v600, 0.5
        %v648 = vmul.f32 %v602, 0.5
        %v649 = vmul.f32 %v604, 0.5
        %v650 = vmul.f32 %v608, 0.5
        %v651 = vmul.f32 %v610, 0.5
        %v652 = vmul.f32 %v612, 0.5
        %v653 = vmul.f32 %v614, 0.5
        %v654 = vmul.f32 %v618, 0.5
        %v655 = vmul.f32 %v620, 0.5
        %v656 = vmul.f32 %v622, 0.5
        %v657 = vmul.f32 %v624, 0.5
        %v658 = vmul.f32 %v548, 0.044715
        %v659 = vmul.f32 %v550, 0.044715
        %v660 = vmul.f32 %v552, 0.044715
        %v661 = vmul.f32 %v554, 0.044715
        %v662 = vmul.f32 %v558, 0.044715
        %v663 = vmul.f32 %v560, 0.044715
        %v664 = vmul.f32 %v562, 0.044715
        %v665 = vmul.f32 %v564, 0.044715
        %v666 = vmul.f32 %v568, 0.044715
        %v667 = vmul.f32 %v570, 0.044715
        %v668 = vmul.f32 %v572, 0.044715
        %v669 = vmul.f32 %v574, 0.044715
        %v670 = vmul.f32 %v578, 0.044715
        %v671 = vmul.f32 %v580, 0.044715
        %v672 = vmul.f32 %v582, 0.044715
        %v673 = vmul.f32 %v584, 0.044715
        %v674 = vmul.f32 %v588, 0.044715
        %v675 = vmul.f32 %v590, 0.044715
        %v676 = vmul.f32 %v592, 0.044715
        %v677 = vmul.f32 %v594, 0.044715
        %v678 = vmul.f32 %v598, 0.044715
        %v679 = vmul.f32 %v600, 0.044715
        %v680 = vmul.f32 %v602, 0.044715
        %v681 = vmul.f32 %v604, 0.044715
        %v682 = vmul.f32 %v608, 0.044715
        %v683 = vmul.f32 %v610, 0.044715
        %v684 = vmul.f32 %v612, 0.044715
        %v685 = vmul.f32 %v614, 0.044715
        %v686 = vmul.f32 %v618, 0.044715
        %v687 = vmul.f32 %v620, 0.044715
        %v688 = vmul.f32 %v622, 0.044715
        %v689 = vmul.f32 %v624, 0.044715
        %v690 = vmul.f32 %v658, %v548
        %v691 = vmul.f32 %v659, %v550
        %v692 = vmul.f32 %v660, %v552
        %v693 = vmul.f32 %v661, %v554
        %v694 = vmul.f32 %v662, %v558
        %v695 = vmul.f32 %v663, %v560
        %v696 = vmul.f32 %v664, %v562
        %v697 = vmul.f32 %v665, %v564
        %v698 = vmul.f32 %v666, %v568
        %v699 = vmul.f32 %v667, %v570
        %v700 = vmul.f32 %v668, %v572
        %v701 = vmul.f32 %v669, %v574
        %v702 = vmul.f32 %v670, %v578
        %v703 = vmul.f32 %v671, %v580
        %v704 = vmul.f32 %v672, %v582
        %v705 = vmul.f32 %v673, %v584
        %v706 = vmul.f32 %v674, %v588
        %v707 = vmul.f32 %v675, %v590
        %v708 = vmul.f32 %v676, %v592
        %v709 = vmul.f32 %v677, %v594
        %v710 = vmul.f32 %v678, %v598
        %v711 = vmul.f32 %v679, %v600
        %v712 = vmul.f32 %v680, %v602
        %v713 = vmul.f32 %v681, %v604
        %v714 = vmul.f32 %v682, %v608
        %v715 = vmul.f32 %v683, %v610
        %v716 = vmul.f32 %v684, %v612
        %v717 = vmul.f32 %v685, %v614
        %v718 = vmul.f32 %v686, %v618
        %v719 = vmul.f32 %v687, %v620
        %v720 = vmul.f32 %v688, %v622
        %v721 = vmul.f32 %v689, %v624
        %v722 = vmul.f32 %v690, %v548
        %v723 = vmul.f32 %v691, %v550
        %v724 = vmul.f32 %v692, %v552
        %v725 = vmul.f32 %v693, %v554
        %v726 = vmul.f32 %v694, %v558
        %v727 = vmul.f32 %v695, %v560
        %v728 = vmul.f32 %v696, %v562
        %v729 = vmul.f32 %v697, %v564
        %v730 = vmul.f32 %v698, %v568
        %v731 = vmul.f32 %v699, %v570
        %v732 = vmul.f32 %v700, %v572
        %v733 = vmul.f32 %v701, %v574
        %v734 = vmul.f32 %v702, %v578
        %v735 = vmul.f32 %v703, %v580
        %v736 = vmul.f32 %v704, %v582
        %v737 = vmul.f32 %v705, %v584
        %v738 = vmul.f32 %v706, %v588
        %v739 = vmul.f32 %v707, %v590
        %v740 = vmul.f32 %v708, %v592
        %v741 = vmul.f32 %v709, %v594
        %v742 = vmul.f32 %v710, %v598
        %v743 = vmul.f32 %v711, %v600
        %v744 = vmul.f32 %v712, %v602
        %v745 = vmul.f32 %v713, %v604
        %v746 = vmul.f32 %v714, %v608
        %v747 = vmul.f32 %v715, %v610
        %v748 = vmul.f32 %v716, %v612
        %v749 = vmul.f32 %v717, %v614
        %v750 = vmul.f32 %v718, %v618
        %v751 = vmul.f32 %v719, %v620
        %v752 = vmul.f32 %v720, %v622
        %v753 = vmul.f32 %v721, %v624
        %v754 = vadd.f32 %v548, %v722
        %v755 = vadd.f32 %v550, %v723
        %v756 = vadd.f32 %v552, %v724
        %v757 = vadd.f32 %v554, %v725
        %v758 = vadd.f32 %v558, %v726
        %v759 = vadd.f32 %v560, %v727
        %v760 = vadd.f32 %v562, %v728
        %v761 = vadd.f32 %v564, %v729
        %v762 = vadd.f32 %v568, %v730
        %v763 = vadd.f32 %v570, %v731
        %v764 = vadd.f32 %v572, %v732
        %v765 = vadd.f32 %v574, %v733
        %v766 = vadd.f32 %v578, %v734
        %v767 = vadd.f32 %v580, %v735
        %v768 = vadd.f32 %v582, %v736
        %v769 = vadd.f32 %v584, %v737
        %v770 = vadd.f32 %v588, %v738
        %v771 = vadd.f32 %v590, %v739
        %v772 = vadd.f32 %v592, %v740
        %v773 = vadd.f32 %v594, %v741
        %v774 = vadd.f32 %v598, %v742
        %v775 = vadd.f32 %v600, %v743
        %v776 = vadd.f32 %v602, %v744
        %v777 = vadd.f32 %v604, %v745
        %v778 = vadd.f32 %v608, %v746
        %v779 = vadd.f32 %v610, %v747
        %v780 = vadd.f32 %v612, %v748
        %v781 = vadd.f32 %v614, %v749
        %v782 = vadd.f32 %v618, %v750
        %v783 = vadd.f32 %v620, %v751
        %v784 = vadd.f32 %v622, %v752
        %v785 = vadd.f32 %v624, %v753
        %v786 = vmul.f32 %v754, 0.7978846
        %v787 = vmul.f32 %v755, 0.7978846
        %v788 = vmul.f32 %v756, 0.7978846
        %v789 = vmul.f32 %v757, 0.7978846
        %v790 = vmul.f32 %v758, 0.7978846
        %v791 = vmul.f32 %v759, 0.7978846
        %v792 = vmul.f32 %v760, 0.7978846
        %v793 = vmul.f32 %v761, 0.7978846
        %v794 = vmul.f32 %v762, 0.7978846
        %v795 = vmul.f32 %v763, 0.7978846
        %v796 = vmul.f32 %v764, 0.7978846
        %v797 = vmul.f32 %v765, 0.7978846
        %v798 = vmul.f32 %v766, 0.7978846
        %v799 = vmul.f32 %v767, 0.7978846
        %v800 = vmul.f32 %v768, 0.7978846
        %v801 = vmul.f32 %v769, 0.7978846
        %v802 = vmul.f32 %v770, 0.7978846
        %v803 = vmul.f32 %v771, 0.7978846
        %v804 = vmul.f32 %v772, 0.7978846
        %v805 = vmul.f32 %v773, 0.7978846
        %v806 = vmul.f32 %v774, 0.7978846
        %v807 = vmul.f32 %v775, 0.7978846
        %v808 = vmul.f32 %v776, 0.7978846
        %v809 = vmul.f32 %v777, 0.7978846
        %v810 = vmul.f32 %v778, 0.7978846
        %v811 = vmul.f32 %v779, 0.7978846
        %v812 = vmul.f32 %v780, 0.7978846
        %v813 = vmul.f32 %v781, 0.7978846
        %v814 = vmul.f32 %v782, 0.7978846
        %v815 = vmul.f32 %v783, 0.7978846
        %v816 = vmul.f32 %v784, 0.7978846
        %v817 = vmul.f32 %v785, 0.7978846
        %v818 = vtanh.pop %v786
        %v819 = vtanh.pop %v787
        %v820 = vtanh.pop %v788
        %v821 = vtanh.pop %v789
        %v822 = vtanh.pop %v790
        %v823 = vtanh.pop %v791
        %v824 = vtanh.pop %v792
        %v825 = vtanh.pop %v793
        %v826 = vtanh.pop %v794
        %v827 = vtanh.pop %v795
        %v828 = vtanh.pop %v796
        %v829 = vtanh.pop %v797
        %v830 = vtanh.pop %v798
        %v831 = vtanh.pop %v799
        %v832 = vtanh.pop %v800
        %v833 = vtanh.pop %v801
        %v834 = vtanh.pop %v802
        %v835 = vtanh.pop %v803
        %v836 = vtanh.pop %v804
        %v837 = vtanh.pop %v805
        %v838 = vtanh.pop %v806
        %v839 = vtanh.pop %v807
        %v840 = vtanh.pop %v808
        %v841 = vtanh.pop %v809
        %v842 = vtanh.pop %v810
        %v843 = vtanh.pop %v811
        %v844 = vtanh.pop %v812
        %v845 = vtanh.pop %v813
        %v846 = vtanh.pop %v814
        %v847 = vtanh.pop %v815
        %v848 = vtanh.pop %v816
        %v849 = vtanh.pop %v817
        %v850 = vadd.f32 %v818, 1.0
        %v851 = vadd.f32 %v819, 1.0
        %v852 = vadd.f32 %v820, 1.0
        %v853 = vadd.f32 %v821, 1.0
        %v854 = vadd.f32 %v822, 1.0
        %v855 = vadd.f32 %v823, 1.0
        %v856 = vadd.f32 %v824, 1.0
        %v857 = vadd.f32 %v825, 1.0
        %v858 = vadd.f32 %v826, 1.0
        %v859 = vadd.f32 %v827, 1.0
        %v860 = vadd.f32 %v828, 1.0
        %v861 = vadd.f32 %v829, 1.0
        %v862 = vadd.f32 %v830, 1.0
        %v863 = vadd.f32 %v831, 1.0
        %v864 = vadd.f32 %v832, 1.0
        %v865 = vadd.f32 %v833, 1.0
        %v866 = vadd.f32 %v834, 1.0
        %v867 = vadd.f32 %v835, 1.0
        %v868 = vadd.f32 %v836, 1.0
        %v869 = vadd.f32 %v837, 1.0
        %v870 = vadd.f32 %v838, 1.0
        %v871 = vadd.f32 %v839, 1.0
        %v872 = vadd.f32 %v840, 1.0
        %v873 = vadd.f32 %v841, 1.0
        %v874 = vadd.f32 %v842, 1.0
        %v875 = vadd.f32 %v843, 1.0
        %v876 = vadd.f32 %v844, 1.0
        %v877 = vadd.f32 %v845, 1.0
        %v878 = vadd.f32 %v846, 1.0
        %v879 = vadd.f32 %v847, 1.0
        %v880 = vadd.f32 %v848, 1.0
        %v881 = vadd.f32 %v849, 1.0
        %v882 = vmul.f32 %v626, %v850
        %v883 = vmul.f32 %v627, %v851
        %v884 = vmul.f32 %v628, %v852
        %v885 = vmul.f32 %v629, %v853
        %v886 = vmul.f32 %v630, %v854
        %v887 = vmul.f32 %v631, %v855
        %v888 = vmul.f32 %v632, %v856
        %v889 = vmul.f32 %v633, %v857
        %v890 = vmul.f32 %v634, %v858
        %v891 = vmul.f32 %v635, %v859
        %v892 = vmul.f32 %v636, %v860
        %v893 = vmul.f32 %v637, %v861
        %v894 = vmul.f32 %v638, %v862
        %v895 = vmul.f32 %v639, %v863
        %v896 = vmul.f32 %v640, %v864
        %v897 = vmul.f32 %v641, %v865
        %v898 = vmul.f32 %v642, %v866
        %v899 = vmul.f32 %v643, %v867
        %v900 = vmul.f32 %v644, %v868
        %v901 = vmul.f32 %v645, %v869
        %v902 = vmul.f32 %v646, %v870
        %v903 = vmul.f32 %v647, %v871
        %v904 = vmul.f32 %v648, %v872
        %v905 = vmul.f32 %v649, %v873
        %v906 = vmul.f32 %v650, %v874
        %v907 = vmul.f32 %v651, %v875
        %v908 = vmul.f32 %v652, %v876
        %v909 = vmul.f32 %v653, %v877
        %v910 = vmul.f32 %v654, %v878
        %v911 = vmul.f32 %v655, %v879
        %v912 = vmul.f32 %v656, %v880
        %v913 = vmul.f32 %v657, %v881
        %v914 = vld [vmem:[#allocation2] sm:$0xff]
        %v915 = vld [vmem:[#allocation2 + $0x8] sm:$0xff]
        %v916 = vld [vmem:[#allocation2 + $0x10] sm:$0xff]
        %v917 = vld [vmem:[#allocation2 + $0x18] sm:$0xff]
        %v918 = vld [vmem:[#allocation2 + $0x20] sm:$0xff]
        %v919 = vld [vmem:[#allocation2 + $0x28] sm:$0xff]
        %v920 = vld [vmem:[#allocation2 + $0x30] sm:$0xff]
        %v921 = vld [vmem:[#allocation2 + $0x38] sm:$0xff]
        %v922 = vld [vmem:[#allocation2 + $0x40] sm:$0xff]
        %v923 = vld [vmem:[#allocation2 + $0x48] sm:$0xff]
        %v924 = vld [vmem:[#allocation2 + $0x50] sm:$0xff]
        %v925 = vld [vmem:[#allocation2 + $0x58] sm:$0xff]
        %v926 = vld [vmem:[#allocation2 + $0x60] sm:$0xff]
        %v927 = vld [vmem:[#allocation2 + $0x68] sm:$0xff]
        %v928 = vld [vmem:[#allocation2 + $0x70] sm:$0xff]
        %v929 = vld [vmem:[#allocation2 + $0x78] sm:$0xff]
        %v930 = vpack.c.bf16 %v884, %v882
        %v931 = vpack.c.bf16 %v885, %v883
        %v932 = vpack.c.bf16 %v888, %v886
        %v933 = vpack.c.bf16 %v889, %v887
        %v934 = vpack.c.bf16 %v892, %v890
        %v935 = vpack.c.bf16 %v893, %v891
        %v936 = vpack.c.bf16 %v896, %v894
        %v937 = vpack.c.bf16 %v897, %v895
        %v938 = vpack.c.bf16 %v900, %v898
        %v939 = vpack.c.bf16 %v901, %v899
        %v940 = vpack.c.bf16 %v904, %v902
        %v941 = vpack.c.bf16 %v905, %v903
        %v942 = vpack.c.bf16 %v908, %v906
        %v943 = vpack.c.bf16 %v909, %v907
        %v944 = vpack.c.bf16 %v912, %v910
        %v945 = vpack.c.bf16 %v913, %v911
        %v946 = vld [vmem:[%s317] sm:$0xf]
        %v947 = vld [vmem:[%s317 + $0x4] sm:$0xf]
        %v948 = vld [vmem:[%s317 + $0x8] sm:$0xf]
        %v949 = vld [vmem:[%s317 + $0xc] sm:$0xf]
        %v950 = vld [vmem:[%s317 + $0x10] sm:$0xf]
        %v951 = vld [vmem:[%s317 + $0x14] sm:$0xf]
        %v952 = vld [vmem:[%s317 + $0x18] sm:$0xf]
        %v953 = vld [vmem:[%s317 + $0x1c] sm:$0xf]
        %v954 = vld [vmem:[%s317 + $0x20] sm:$0xf]
        %v955 = vld [vmem:[%s317 + $0x24] sm:$0xf]
        %v956 = vld [vmem:[%s317 + $0x28] sm:$0xf]
        %v957 = vld [vmem:[%s317 + $0x2c] sm:$0xf]
        %v958 = vld [vmem:[%s317 + $0x30] sm:$0xf]
        %v959 = vld [vmem:[%s317 + $0x34] sm:$0xf]
        %v960 = vld [vmem:[%s317 + $0x38] sm:$0xf]
        %v961 = vld [vmem:[%s317 + $0x3c] sm:$0xf]
        %v962 = vld [vmem:[%s317 + $0x40] sm:$0xf]
        %v963 = vld [vmem:[%s317 + $0x44] sm:$0xf]
        %v964 = vld [vmem:[%s317 + $0x48] sm:$0xf]
        %v965 = vld [vmem:[%s317 + $0x4c] sm:$0xf]
        %v966 = vld [vmem:[%s317 + $0x50] sm:$0xf]
        %v967 = vld [vmem:[%s317 + $0x54] sm:$0xf]
        %v968 = vld [vmem:[%s317 + $0x58] sm:$0xf]
        %v969 = vld [vmem:[%s317 + $0x5c] sm:$0xf]
        %v970 = vld [vmem:[%s317 + $0x60] sm:$0xf]
        %v971 = vld [vmem:[%s317 + $0x64] sm:$0xf]
        %v972 = vld [vmem:[%s317 + $0x68] sm:$0xf]
        %v973 = vld [vmem:[%s317 + $0x6c] sm:$0xf]
        %v974 = vld [vmem:[%s317 + $0x70] sm:$0xf]
        %v975 = vld [vmem:[%s317 + $0x74] sm:$0xf]
        %v976 = vld [vmem:[%s317 + $0x78] sm:$0xf]
        %v977 = vld [vmem:[%s317 + $0x7c] sm:$0xf]
        %v1010 = vunpack.c.l.b16 %v946
        %v1011 = vunpack.c.l.b16 %v947
        %v1012 = vunpack.c.l.b16 %v948
        %v1013 = vunpack.c.l.b16 %v949
        %v1014 = vunpack.c.l.b16 %v950
        %v1015 = vunpack.c.l.b16 %v951
        %v1016 = vunpack.c.l.b16 %v952
        %v1017 = vunpack.c.l.b16 %v953
        %v1018 = vunpack.c.l.b16 %v954
        %v1019 = vunpack.c.l.b16 %v955
        %v1020 = vunpack.c.l.b16 %v956
        %v1021 = vunpack.c.l.b16 %v957
        %v1022 = vunpack.c.l.b16 %v958
        %v1023 = vunpack.c.l.b16 %v959
        %v1024 = vunpack.c.l.b16 %v960
        %v1025 = vunpack.c.l.b16 %v961
        %v1026 = vunpack.c.l.b16 %v962
        %v1027 = vunpack.c.l.b16 %v963
        %v1028 = vunpack.c.l.b16 %v964
        %v1029 = vunpack.c.l.b16 %v965
        %v1030 = vunpack.c.l.b16 %v966
        %v1031 = vunpack.c.l.b16 %v967
        %v1032 = vunpack.c.l.b16 %v968
        %v1033 = vunpack.c.l.b16 %v969
        %v1034 = vunpack.c.l.b16 %v970
        %v1035 = vunpack.c.l.b16 %v971
        %v1036 = vunpack.c.l.b16 %v972
        %v1037 = vunpack.c.l.b16 %v973
        %v1038 = vunpack.c.l.b16 %v974
        %v1039 = vunpack.c.l.b16 %v975
        %v1040 = vunpack.c.l.b16 %v976
        %v1041 = vunpack.c.l.b16 %v977
        %v1042 = vpack.c.b16 %v1011, %v1010
        %v1043 = vpack.c.b16 %v1013, %v1012
        %v1044 = vpack.c.b16 %v1015, %v1014
        %v1045 = vpack.c.b16 %v1017, %v1016
        %v1046 = vpack.c.b16 %v1019, %v1018
        %v1047 = vpack.c.b16 %v1021, %v1020
        %v1048 = vpack.c.b16 %v1023, %v1022
        %v1049 = vpack.c.b16 %v1025, %v1024
        %v1050 = vpack.c.b16 %v1027, %v1026
        %v1051 = vpack.c.b16 %v1029, %v1028
        %v1052 = vpack.c.b16 %v1031, %v1030
        %v1053 = vpack.c.b16 %v1033, %v1032
        %v1054 = vpack.c.b16 %v1035, %v1034
        %v1055 = vpack.c.b16 %v1037, %v1036
        %v1056 = vpack.c.b16 %v1039, %v1038
        %v1057 = vpack.c.b16 %v1041, %v1040
        %1074 = vmatprep.subr.bf16.mxu0 0
        %1075 = vmatpush1.bf16.msra.mxu0 %v1042
        %1076 = vmatprep.subr.bf16.mxu0 0
        %1077 = vmatpush1.bf16.msra.mxu0 %v1043
        %1078 = vmatprep.subr.bf16.mxu0 0
        %1079 = vmatpush1.bf16.msra.mxu0 %v1044
        %1080 = vmatprep.subr.bf16.mxu0 0
        %1081 = vmatpush1.bf16.msra.mxu0 %v1045
        %1082 = vmatprep.subr.bf16.mxu0 0
        %1083 = vmatpush1.bf16.msra.mxu0 %v1046
        %1084 = vmatprep.subr.bf16.mxu0 0
        %1085 = vmatpush1.bf16.msra.mxu0 %v1047
        %1086 = vmatprep.subr.bf16.mxu0 0
        %1087 = vmatpush1.bf16.msra.mxu0 %v1048
        %1088 = vmatprep.subr.bf16.mxu0 0
        %1089 = vmatpush1.bf16.msra.mxu0 %v1049
        %1090 = vmatprep.subr.bf16.mxu0 0
        %1091 = vmatpush1.bf16.msra.mxu0 %v1050
        %1092 = vmatprep.subr.bf16.mxu0 0
        %1093 = vmatpush1.bf16.msra.mxu0 %v1051
        %1094 = vmatprep.subr.bf16.mxu0 0
        %1095 = vmatpush1.bf16.msra.mxu0 %v1052
        %1096 = vmatprep.subr.bf16.mxu0 0
        %1097 = vmatpush1.bf16.msra.mxu0 %v1053
        %1098 = vmatprep.subr.bf16.mxu0 0
        %1099 = vmatpush1.bf16.msra.mxu0 %v1054
        %1100 = vmatprep.subr.bf16.mxu0 0
        %1101 = vmatpush1.bf16.msra.mxu0 %v1055
        %1102 = vmatprep.subr.bf16.mxu0 0
        %1103 = vmatpush1.bf16.msra.mxu0 %v1056
        %1104 = vmatprep.subr.bf16.mxu0 0
        %1105 = vmatpush1.bf16.msra.mxu0 %v1057
        %1106 = vmatprep.mubr.bf16.mxu0 %v931
        %1107 = vmatmul.mubr.bf16.gmra.mrb[0].mxu0 %v930
        %v1108 = vpop.f32.mrb[0].mxu0
        %v1109 = vadd.f32 0.0, %v1108
        %v1110 = vpop.f32.mrb[0].mxu0
        %v1111 = vpop.f32.mrb[0].mxu0
        %v1112 = vadd.f32 0.0, %v1111
        %v1113 = vpop.f32.mrb[0].mxu0
        %1114 = vmatprep.mubr.bf16.mxu0 %v933
        %1115 = vmatmul.mubr.bf16.gmra.mrb[0].mxu0 %v932
        %v1116 = vpop.f32.mrb[0].mxu0
        %v1117 = vadd.f32 0.0, %v1116
        %v1118 = vpop.f32.mrb[0].mxu0
        %v1119 = vpop.f32.mrb[0].mxu0
        %v1120 = vadd.f32 0.0, %v1119
        %v1121 = vpop.f32.mrb[0].mxu0
        %1122 = vmatprep.mubr.bf16.mxu0 %v935
        %1123 = vmatmul.mubr.bf16.gmra.mrb[0].mxu0 %v934
        %v1124 = vpop.f32.mrb[0].mxu0
        %v1125 = vadd.f32 0.0, %v1124
        %v1126 = vpop.f32.mrb[0].mxu0
        %v1127 = vpop.f32.mrb[0].mxu0
        %v1128 = vadd.f32 0.0, %v1127
        %v1129 = vpop.f32.mrb[0].mxu0
        %1130 = vmatprep.mubr.bf16.mxu0 %v937
        %1131 = vmatmul.mubr.bf16.gmra.mrb[0].mxu0 %v936
        %v1132 = vpop.f32.mrb[0].mxu0
        %v1133 = vadd.f32 0.0, %v1132
        %v1134 = vpop.f32.mrb[0].mxu0
        %v1135 = vpop.f32.mrb[0].mxu0
        %v1136 = vadd.f32 0.0, %v1135
        %v1137 = vpop.f32.mrb[0].mxu0
        %1138 = vmatprep.mubr.bf16.mxu0 %v939
        %1139 = vmatmul.mubr.bf16.gmra.mrb[0].mxu0 %v938
        %v1140 = vpop.f32.mrb[0].mxu0
        %v1141 = vadd.f32 0.0, %v1140
        %v1142 = vpop.f32.mrb[0].mxu0
        %v1143 = vpop.f32.mrb[0].mxu0
        %v1144 = vadd.f32 0.0, %v1143
        %v1145 = vpop.f32.mrb[0].mxu0
        %1146 = vmatprep.mubr.bf16.mxu0 %v941
        %1147 = vmatmul.mubr.bf16.gmra.mrb[0].mxu0 %v940
        %v1148 = vpop.f32.mrb[0].mxu0
        %v1149 = vadd.f32 0.0, %v1148
        %v1150 = vpop.f32.mrb[0].mxu0
        %v1151 = vpop.f32.mrb[0].mxu0
        %v1152 = vadd.f32 0.0, %v1151
        %v1153 = vpop.f32.mrb[0].mxu0
        %1154 = vmatprep.mubr.bf16.mxu0 %v943
        %1155 = vmatmul.mubr.bf16.gmra.mrb[0].mxu0 %v942
        %v1156 = vpop.f32.mrb[0].mxu0
        %v1157 = vadd.f32 0.0, %v1156
        %v1158 = vpop.f32.mrb[0].mxu0
        %v1159 = vpop.f32.mrb[0].mxu0
        %v1160 = vadd.f32 0.0, %v1159
        %v1161 = vpop.f32.mrb[0].mxu0
        %1162 = vmatprep.mubr.bf16.mxu0 %v945
        %1163 = vmatmul.mubr.bf16.gmra.mrb[0].mxu0 %v944
        %v1164 = vpop.f32.mrb[0].mxu0
        %v1165 = vadd.f32 0.0, %v1164
        %v1166 = vpop.f32.mrb[0].mxu0
        %v1167 = vpop.f32.mrb[0].mxu0
        %v1168 = vadd.f32 0.0, %v1167
        %v1169 = vpop.f32.mrb[0].mxu0
        %1170 = vdwg.mxu0
        %v1171 = vadd.f32 %v914, %v1109
        %v1172 = vadd.f32 %v915, %v1112
        %v1173 = vadd.f32 %v916, %v1117
        %v1174 = vadd.f32 %v917, %v1120
        %v1175 = vadd.f32 %v918, %v1125
        %v1176 = vadd.f32 %v919, %v1128
        %v1177 = vadd.f32 %v920, %v1133
        %v1178 = vadd.f32 %v921, %v1136
        %v1179 = vadd.f32 %v922, %v1141
        %v1180 = vadd.f32 %v923, %v1144
        %v1181 = vadd.f32 %v924, %v1149
        %v1182 = vadd.f32 %v925, %v1152
        %v1183 = vadd.f32 %v926, %v1157
        %v1184 = vadd.f32 %v927, %v1160
        %v1185 = vadd.f32 %v928, %v1165
        %v1186 = vadd.f32 %v929, %v1168
        %1187 = vst [vmem:[#allocation2] sm:$0xff] %v1171
        %1188 = vst [vmem:[#allocation2 + $0x8] sm:$0xff] %v1172
        %1189 = vst [vmem:[#allocation2 + $0x10] sm:$0xff] %v1173
        %1190 = vst [vmem:[#allocation2 + $0x18] sm:$0xff] %v1174
        %1191 = vst [vmem:[#allocation2 + $0x20] sm:$0xff] %v1175
        %1192 = vst [vmem:[#allocation2 + $0x28] sm:$0xff] %v1176
        %1193 = vst [vmem:[#allocation2 + $0x30] sm:$0xff] %v1177
        %1194 = vst [vmem:[#allocation2 + $0x38] sm:$0xff] %v1178
        %1195 = vst [vmem:[#allocation2 + $0x40] sm:$0xff] %v1179
        %1196 = vst [vmem:[#allocation2 + $0x48] sm:$0xff] %v1180
        %1197 = vst [vmem:[#allocation2 + $0x50] sm:$0xff] %v1181
        %1198 = vst [vmem:[#allocation2 + $0x58] sm:$0xff] %v1182
        %1199 = vst [vmem:[#allocation2 + $0x60] sm:$0xff] %v1183
        %1200 = vst [vmem:[#allocation2 + $0x68] sm:$0xff] %v1184
        %1201 = vst [vmem:[#allocation2 + $0x70] sm:$0xff] %v1185
        %1202 = vst [vmem:[#allocation2 + $0x78] sm:$0xff] %v1186
        // Predicated region
        $region49: #{tpu_custom_call.1} parent=39 // pred_check
          %p1203 = pneg %p321
        $region50: #{tpu_custom_call.1} parent=39 // pred_check_branch
          %1205 = sbr.rel (%p1203) target = $region52
        $region51: #{tpu_custom_call.1} parent=39 // pred_region
          %v1206 = vld [vmem:[#allocation2] sm:$0xff]
          %v1207 = vld [vmem:[#allocation2 + $0x8] sm:$0xff]
          %v1208 = vld [vmem:[#allocation2 + $0x10] sm:$0xff]
          %v1209 = vld [vmem:[#allocation2 + $0x18] sm:$0xff]
          %v1210 = vld [vmem:[#allocation2 + $0x20] sm:$0xff]
          %v1211 = vld [vmem:[#allocation2 + $0x28] sm:$0xff]
          %v1212 = vld [vmem:[#allocation2 + $0x30] sm:$0xff]
          %v1213 = vld [vmem:[#allocation2 + $0x38] sm:$0xff]
          %v1214 = vld [vmem:[#allocation2 + $0x40] sm:$0xff]
          %v1215 = vld [vmem:[#allocation2 + $0x48] sm:$0xff]
          %v1216 = vld [vmem:[#allocation2 + $0x50] sm:$0xff]
          %v1217 = vld [vmem:[#allocation2 + $0x58] sm:$0xff]
          %v1218 = vld [vmem:[#allocation2 + $0x60] sm:$0xff]
          %v1219 = vld [vmem:[#allocation2 + $0x68] sm:$0xff]
          %v1220 = vld [vmem:[#allocation2 + $0x70] sm:$0xff]
          %v1221 = vld [vmem:[#allocation2 + $0x78] sm:$0xff]
          %v1222 = vld [vmem:[%s4] sm:$0x1]
          %v1224 = vlaneseq
          %v1225 = vshrl.u32 %v1224, 7
          %v1226 = vsub.s32 0, %v1225
          %v1227 = vrot.slane %v1222, %v1226
          %v1229 = vadd.f32 %v1206, %v1227
          %v1230 = vadd.f32 %v1207, %v1227
          %v1231 = vadd.f32 %v1208, %v1227
          %v1232 = vadd.f32 %v1209, %v1227
          %v1233 = vadd.f32 %v1210, %v1227
          %v1234 = vadd.f32 %v1211, %v1227
          %v1235 = vadd.f32 %v1212, %v1227
          %v1236 = vadd.f32 %v1213, %v1227
          %v1237 = vadd.f32 %v1214, %v1227
          %v1238 = vadd.f32 %v1215, %v1227
          %v1239 = vadd.f32 %v1216, %v1227
          %v1240 = vadd.f32 %v1217, %v1227
          %v1241 = vadd.f32 %v1218, %v1227
          %v1242 = vadd.f32 %v1219, %v1227
          %v1243 = vadd.f32 %v1220, %v1227
          %v1244 = vadd.f32 %v1221, %v1227
          %v1245 = vunpack.c.l.bf16 %v341
          %v1246 = vunpack.c.l.bf16 %v342
          %v1247 = vunpack.c.l.bf16 %v343
          %v1248 = vunpack.c.l.bf16 %v344
          %v1249 = vunpack.c.l.bf16 %v345
          %v1250 = vunpack.c.l.bf16 %v346
          %v1251 = vunpack.c.l.bf16 %v347
          %v1252 = vunpack.c.l.bf16 %v348
          %v1253 = vunpack.c.l.bf16 %v349
          %v1254 = vunpack.c.l.bf16 %v350
          %v1255 = vunpack.c.l.bf16 %v351
          %v1256 = vunpack.c.l.bf16 %v352
          %v1257 = vunpack.c.l.bf16 %v353
          %v1258 = vunpack.c.l.bf16 %v354
          %v1259 = vunpack.c.l.bf16 %v355
          %v1260 = vunpack.c.l.bf16 %v356
          %v1261 = vadd.f32 %v1245, %v1229
          %v1262 = vadd.f32 %v1246, %v1230
          %v1263 = vadd.f32 %v1247, %v1231
          %v1264 = vadd.f32 %v1248, %v1232
          %v1265 = vadd.f32 %v1249, %v1233
          %v1266 = vadd.f32 %v1250, %v1234
          %v1267 = vadd.f32 %v1251, %v1235
          %v1268 = vadd.f32 %v1252, %v1236
          %v1269 = vadd.f32 %v1253, %v1237
          %v1270 = vadd.f32 %v1254, %v1238
          %v1271 = vadd.f32 %v1255, %v1239
          %v1272 = vadd.f32 %v1256, %v1240
          %v1273 = vadd.f32 %v1257, %v1241
          %v1274 = vadd.f32 %v1258, %v1242
          %v1275 = vadd.f32 %v1259, %v1243
          %v1276 = vadd.f32 %v1260, %v1244
          %v1277 = vpack.c.bf16 %v1262, %v1261
          %v1278 = vpack.c.bf16 %v1264, %v1263
          %v1279 = vpack.c.bf16 %v1266, %v1265
          %v1280 = vpack.c.bf16 %v1268, %v1267
          %v1281 = vpack.c.bf16 %v1270, %v1269
          %v1282 = vpack.c.bf16 %v1272, %v1271
          %v1283 = vpack.c.bf16 %v1274, %v1273
          %v1284 = vpack.c.bf16 %v1276, %v1275
          %v1293 = vunpack.c.l.b16 %v1277
          %v1294 = vunpack.c.h.b16 %v1277
          %v1295 = vunpack.c.l.b16 %v1278
          %v1296 = vunpack.c.h.b16 %v1278
          %v1297 = vunpack.c.l.b16 %v1279
          %v1298 = vunpack.c.h.b16 %v1279
          %v1299 = vunpack.c.l.b16 %v1280
          %v1300 = vunpack.c.h.b16 %v1280
          %v1301 = vunpack.c.l.b16 %v1281
          %v1302 = vunpack.c.h.b16 %v1281
          %v1303 = vunpack.c.l.b16 %v1282
          %v1304 = vunpack.c.h.b16 %v1282
          %v1305 = vunpack.c.l.b16 %v1283
          %v1306 = vunpack.c.h.b16 %v1283
          %v1307 = vunpack.c.l.b16 %v1284
          %v1308 = vunpack.c.h.b16 %v1284
          %v1309 = vpack.c.b16 %v1293, %v1293
          %v1310 = vpack.c.b16 %v1294, %v1294
          %v1311 = vpack.c.b16 %v1295, %v1295
          %v1312 = vpack.c.b16 %v1296, %v1296
          %v1313 = vpack.c.b16 %v1297, %v1297
          %v1314 = vpack.c.b16 %v1298, %v1298
          %v1315 = vpack.c.b16 %v1299, %v1299
          %v1316 = vpack.c.b16 %v1300, %v1300
          %v1317 = vpack.c.b16 %v1301, %v1301
          %v1318 = vpack.c.b16 %v1302, %v1302
          %v1319 = vpack.c.b16 %v1303, %v1303
          %v1320 = vpack.c.b16 %v1304, %v1304
          %v1321 = vpack.c.b16 %v1305, %v1305
          %v1322 = vpack.c.b16 %v1306, %v1306
          %v1323 = vpack.c.b16 %v1307, %v1307
          %v1324 = vpack.c.b16 %v1308, %v1308
          %1341 = vst [vmem:[%s300] sm:$0xf] %v1309
          %1342 = vst [vmem:[%s300 + $0x4] sm:$0xf] %v1310
          %1343 = vst [vmem:[%s300 + $0x8] sm:$0xf] %v1311
          %1344 = vst [vmem:[%s300 + $0xc] sm:$0xf] %v1312
          %1345 = vst [vmem:[%s300 + $0x10] sm:$0xf] %v1313
          %1346 = vst [vmem:[%s300 + $0x14] sm:$0xf] %v1314
          %1347 = vst [vmem:[%s300 + $0x18] sm:$0xf] %v1315
          %1348 = vst [vmem:[%s300 + $0x1c] sm:$0xf] %v1316
          %1349 = vst [vmem:[%s300 + $0x20] sm:$0xf] %v1317
          %1350 = vst [vmem:[%s300 + $0x24] sm:$0xf] %v1318
          %1351 = vst [vmem:[%s300 + $0x28] sm:$0xf] %v1319
          %1352 = vst [vmem:[%s300 + $0x2c] sm:$0xf] %v1320
          %1353 = vst [vmem:[%s300 + $0x30] sm:$0xf] %v1321
          %1354 = vst [vmem:[%s300 + $0x34] sm:$0xf] %v1322
          %1355 = vst [vmem:[%s300 + $0x38] sm:$0xf] %v1323
          %1356 = vst [vmem:[%s300 + $0x3c] sm:$0xf] %v1324
        $region52: #{tpu_custom_call.1} parent=39 // pred_fallthru
          _
        %s1357 = sand.u32 %s167, 1
        %s1358 = scalar_lea.sflag [#allocation5], %s1357
        %s1359 = sand.u32 %s167, 1
        %s1360 = smul.addr %s1359, 64
        %s1361 = scalar_lea.vmem [#allocation6], %s1360
        // Predicated region
        $region53: #{tpu_custom_call.1} parent=39 // pred_check
          %p1362 = pneg %p177
        $region54: #{tpu_custom_call.1} parent=39 // pred_check_branch
          %1364 = sbr.rel (%p1362) target = $region56
        $region55: #{tpu_custom_call.1} parent=39 // pred_region
          %s1365 = smul.u32 16, %s26
          %s1367 = ssub.s32 1024, 1024
          %1368 = vsyncadd %s1358, %s1367
          %s1369 = smul.addr %s1365, 64
          %s1370 = scalar_lea.hbm %s5, %s1369
          %s1371 = sshll.u32 %s1361, 4
          %s1372 = int_to_ptr.vmem [resolvable:$true] %s1371
          %1377 = dma.vmem_to_hbm [thread:$0]  %s1372, 1024, %s1370, %s1358, 64, 64, 4
        $region56: #{tpu_custom_call.1} parent=39 // pred_fallthru
          _
      $region40: #{tpu_custom_call.1} parent=5 // pred_fallthru
        _
      %p1378 = scmp.le.s32.totalorder 2, %s17
      // Predicated region
      $region57: #{tpu_custom_call.1} parent=5 // pred_check
        %p1379 = pneg %p1378
      $region58: #{tpu_custom_call.1} parent=5 // pred_check_branch
        %1381 = sbr.rel (%p1379) target = $region60
      $region59: #{tpu_custom_call.1} parent=5 // pred_region
        %s1382 = ssub.s32 %s17, 2
        // Predicated region
        $region61: #{tpu_custom_call.1} parent=59 // pred_check
          %p1383 = pneg %p183
        $region62: #{tpu_custom_call.1} parent=59 // pred_check_branch
          %1385 = sbr.rel (%p1383) target = $region64
        $region63: #{tpu_custom_call.1} parent=59 // pred_region
          %s1386 = sand.u32 %s168, 1
          %s1387 = scalar_lea.sflag [#allocation5], %s1386
          %s1388 = sand.u32 %s168, 1
          %s1389 = smul.addr %s1388, 64
          %s1390 = scalar_lea.vmem [#allocation6], %s1389
          %1391 = dma.done %s1387, 1024
        $region64: #{tpu_custom_call.1} parent=59 // pred_fallthru
          _
      $region60: #{tpu_custom_call.1} parent=5 // pred_fallthru
        _
    $region6: #{tpu_custom_call.1} parent=1 // loop_footer
      %s21 = sadd.s32 1, %s17
    $region7: #{tpu_custom_call.1} parent=1 // loop_footer_branch
      %16 = sbr.rel target = $region3
    $region8: #{tpu_custom_call.1} parent=1 // loop_exit
      _
    %1392 = vsyncpa [#allocation4], 1
    %s1393 = scalar_lea.sflag [#allocation4], 1
    %1394 = vsyncpa %s1393, 1
    %1395 = vsyncpa [#allocation5], 1
    %s1396 = scalar_lea.sflag [#allocation5], 1
    %1397 = vsyncpa %s1396, 1

</llo_original>
